<compile_context>
chip_gen: v5e
topology: v5e:2x2
jax: 0.10.0
libtpu: 0.0.40
codegen_flags: <defaults>
</compile_context>

<pallas_src>
import math

import jax
import jax.numpy as jnp
from jax.experimental import pallas as pl
from jax.experimental.pallas import tpu as pltpu

_BN_EPS = 1e-5


# ----------------------------------------------------------------------------
# Kernel
# ----------------------------------------------------------------------------
def _make_critic_kernel(h0, num_extra_hidden):
    """Fused critic kernel. h0 = width of the state-input layer (sublane split)."""

    def kernel(xin_ref, w1c_ref, b1s_ref, w2_ref, shift2_ref, *rest):
        # rest = [whT_i, bhT_i]*, woT_pad, bo, out_ref
        out_ref = rest[-1]
        woT_ref, bo_ref = rest[-3], rest[-2]

        xin = xin_ref[...]                                  # (d_in, TM) bf16

        # One MXU pass over the block-diagonal combined weight:
        #   rows 0:h0  = state @ Ws            (pre-bias, pre-relu xs, transposed)
        #   rows h0:   = action @ (Wa_a*scale) (action term of layer 2, transposed)
        z1 = jnp.dot(w1c_ref[...], xin, preferred_element_type=jnp.float32)
        xs = jnp.maximum(z1[:h0, :] + b1s_ref[...], 0.0)    # (h0, TM) f32
        act_term = z1[h0:, :]                               # (h1, TM) f32

        # Layer 2 (action input layer) with eval-mode BN folded into W2 / shift2.
        z2 = (jnp.dot(w2_ref[...], xs.astype(jnp.bfloat16),
                      preferred_element_type=jnp.float32)
              + act_term + shift2_ref[...])
        x = jnp.maximum(z2, 0.0)                            # (h1, TM) f32

        # Optional extra hidden layers (none for the default [64, 64] config).
        for i in range(num_extra_hidden):
            w_ref, b_ref = rest[2 * i], rest[2 * i + 1]
            x = jnp.maximum(
                jnp.dot(w_ref[...], x.astype(jnp.bfloat16),
                        preferred_element_type=jnp.float32) + b_ref[...],
                0.0)

        # Output layer: woT_pad is (8, h_last) with row 0 = wo; the Q values come
        # out lane-packed in row 0 -> a (1, TM) lane-dense store (4 B per row).
        q = jnp.dot(woT_ref[...], x.astype(jnp.bfloat16),
                    preferred_element_type=jnp.float32)     # (8, TM)
        out_ref[...] = (q[0:1, :] + bo_ref[...]).astype(out_ref.dtype)

    return kernel


# ----------------------------------------------------------------------------
# Parameter preparation (done once, outside the per-step call)
# ----------------------------------------------------------------------------
def prepare_params(params):
    """Converts raw f32 params into kernel-ready (transposed, bf16, BN-folded) operands."""
    ws = params["ws"]                    # (s_all, h0)
    s_all, h0 = ws.shape
    wa = params["wa"]                    # (h0 + a_all, h1)
    a_all = wa.shape[0] - h0
    h1 = wa.shape[1]
    wa_s, wa_a = wa[:h0], wa[h0:]

    # Eval-mode BatchNorm folded into the layer-2 weights and shift.
    inv_std = 1.0 / jnp.sqrt(params["bn_var"] + _BN_EPS)            # (1, h1)
    bn_scale = params["bn_gamma"] * inv_std                          # (1, h1)
    bn_shift = params["bn_beta"] - params["bn_mean"] * bn_scale      # (1, h1)

    w2 = (wa_s * bn_scale).T                                         # (h1, h0)
    wa_a_sc = (wa_a * bn_scale).T                                    # (h1, a_all)
    shift2 = (params["ba"] * bn_scale + bn_shift).T                  # (h1, 1)

    # Block-diagonal combined first-pass weight over [state | action].
    w1c = jnp.zeros((h0 + h1, s_all + a_all), jnp.float32)
    w1c = w1c.at[:h0, :s_all].set(ws.T)
    w1c = w1c.at[h0:, s_all:].set(wa_a_sc)

    b1s = params["bs"].T                                             # (h0, 1)

    bf = lambda w: w.astype(jnp.bfloat16)
    prepared = [bf(w1c), b1s.astype(jnp.float32), bf(w2), shift2.astype(jnp.float32)]

    i = 0
    while f"wh{i}" in params:
        prepared += [bf(params[f"wh{i}"].T),
                     params[f"bh{i}"].T.astype(jnp.float32)]
        i += 1

    h_last = params["wo"].shape[0]
    woT_pad = jnp.zeros((8, h_last), jnp.float32).at[0, :].set(params["wo"][:, 0])
    bo = params["bo"].reshape(1, 1).astype(jnp.float32)
    prepared += [bf(woT_pad), bo]
    return prepared


# ----------------------------------------------------------------------------
# Forward wrapper
# ----------------------------------------------------------------------------
def _round_up(x, m):
    return ((x + m - 1) // m) * m


def _ceil_div(a, b):
    return -(-a // b)


def maddpg_critic_forward(state, action, prepared, *, tm_max=2048):
    """state: (B, state_size*num_agents) f32, action: (B, action_size*num_agents) f32.

    Returns (B, 1) f32 Q-values (eval-mode BatchNorm).
    """
    batch = state.shape[0]

    # Single bf16 [state | action] stream, transposed so batch rides the lane axis.
    xin = jnp.concatenate([state, action], axis=1).astype(jnp.bfloat16)  # (B, d_in)
    d_in = xin.shape[1]

    # Even batch split into as few tiles as possible; tm is a multiple of 128
    # (batch is the lane dim).  Force >= 2 tiles for large batches so both v7x
    # TensorCores get work (harmless on single-TC v5e/v6e).
    n_tiles = _ceil_div(batch, tm_max)
    if n_tiles == 1 and batch > 256:
        n_tiles = 2
    tm = _round_up(_ceil_div(batch, n_tiles), 128)
    b_pad = n_tiles * tm
    if b_pad != batch:
        xin = jnp.pad(xin, ((0, b_pad - batch), (0, 0)))
    xin_t = xin.T                                                        # (d_in, b_pad)

    h0 = prepared[1].shape[0]
    num_extra = (len(prepared) - 6) // 2
    kernel = _make_critic_kernel(h0, num_extra)

    def resident_spec(arr):
        return pl.BlockSpec(arr.shape, lambda i: (0, 0))

    in_specs = ([pl.BlockSpec((d_in, tm), lambda i: (0, i))]
                + [resident_spec(p) for p in prepared])

    out = pl.pallas_call(
        kernel,
        out_shape=jax.ShapeDtypeStruct((1, b_pad), jnp.float32),
        grid=(n_tiles,),
        in_specs=in_specs,
        out_specs=pl.BlockSpec((1, tm), lambda i: (0, i)),
        compiler_params=pltpu.CompilerParams(
            dimension_semantics=("parallel",)),
    )(xin_t, *prepared)

    return out[0, :batch].reshape(batch, 1)


# ----------------------------------------------------------------------------
# Parameter init (mirrors the PyTorch module's reset_parameters + BN defaults)
# ----------------------------------------------------------------------------
def init_params(key, state_size, action_size, num_agents, hidden_layers):
    assert len(hidden_layers) >= 2
    s_all = state_size * num_agents
    a_all = action_size * num_agents
    h = list(hidden_layers)

    n_linear = 2 + max(0, len(h) - 2) + 1
    keys = jax.random.split(key, 2 * n_linear + 4)
    ki = iter(keys)

    def linear(fan_in, fan_out, w_lim):
        # Biases keep nn.Linear default init U(-1/sqrt(fan_in), 1/sqrt(fan_in)).
        b_lim = 1.0 / math.sqrt(fan_in)
        w = jax.random.uniform(next(ki), (fan_in, fan_out), jnp.float32, -w_lim, w_lim)
        b = jax.random.uniform(next(ki), (1, fan_out), jnp.float32, -b_lim, b_lim)
        return w, b

    params = {}
    # hidden_init uses weight.size()[0] == out_features for PyTorch's (out, in)
    # layout, so the limit below intentionally uses the OUT dimension.
    params["ws"], params["bs"] = linear(s_all, h[0], 1.0 / math.sqrt(h[0]))
    params["wa"], params["ba"] = linear(h[0] + a_all, h[1], 1.0 / math.sqrt(h[1]))
    for i, (cur, nxt) in enumerate(zip(h[1:], h[2:])):
        params[f"wh{i}"], params[f"bh{i}"] = linear(cur, nxt, 1.0 / math.sqrt(nxt))
    params["wo"], params["bo"] = linear(h[-1], 1, 3e-3)

    # BatchNorm1d(h[1]) state -- randomized slightly so the BN path is exercised.
    params["bn_gamma"] = 1.0 + 0.1 * jax.random.normal(next(ki), (1, h[1]), jnp.float32)
    params["bn_beta"] = 0.1 * jax.random.normal(next(ki), (1, h[1]), jnp.float32)
    params["bn_mean"] = 0.1 * jax.random.normal(next(ki), (1, h[1]), jnp.float32)
    params["bn_var"] = jnp.abs(
        1.0 + 0.1 * jax.random.normal(next(ki), (1, h[1]), jnp.float32))
    return params


def reference_forward(state, action, params):
    """Plain-JAX (f32) reference of the PyTorch forward (eval-mode BN)."""
    xs = jnp.maximum(state @ params["ws"] + params["bs"], 0.0)
    x = jnp.concatenate([xs, action], axis=1)
    z = x @ params["wa"] + params["ba"]
    z = ((z - params["bn_mean"]) / jnp.sqrt(params["bn_var"] + _BN_EPS)
         * params["bn_gamma"] + params["bn_beta"])
    x = jnp.maximum(z, 0.0)
    i = 0
    while f"wh{i}" in params:
        x = jnp.maximum(x @ params[f"wh{i}"] + params[f"bh{i}"], 0.0)
        i += 1
    return x @ params["wo"] + params["bo"]


# ----------------------------------------------------------------------------
# Example / self-test
# ----------------------------------------------------------------------------
if __name__ == "__main__":
    configs = [
        # default architecture, tiny batch (single tile)
        dict(state_size=24, action_size=2, num_agents=2,
             hidden_layers=[64, 64], batch=8),
        # extra hidden layer + batch large enough to exercise the 2-tile grid path
        dict(state_size=24, action_size=2, num_agents=2,
             hidden_layers=[64, 64, 32], batch=300),
    ]

    key = jax.random.PRNGKey(0)
    for cfg in configs:
        key, kp, ks, ka = jax.random.split(key, 4)
        params = init_params(kp, cfg["state_size"], cfg["action_size"],
                             cfg["num_agents"], cfg["hidden_layers"])
        state = jax.random.normal(
            ks, (cfg["batch"], cfg["state_size"] * cfg["num_agents"]), jnp.float32)
        action = jnp.tanh(jax.random.normal(
            ka, (cfg["batch"], cfg["action_size"] * cfg["num_agents"]), jnp.float32))

        prepared = prepare_params(params)
        q = jax.block_until_ready(maddpg_critic_forward(state, action, prepared))
        ref = reference_forward(state, action, params)

        assert q.shape == (cfg["batch"], 1)
        # bf16 operands (f32 accumulation) vs f32 reference -> loose tolerance.
        assert jnp.allclose(q, ref, atol=2e-2, rtol=2e-2), "mismatch vs JAX reference"

    print("KERNEL_OK")
</pallas_src>

<mosaic_0001>
module attributes {stable_mosaic.version = 11 : i64} {
  func.func @kernel(%arg0: i32, %arg1: memref<52x128xbf16, #tpu.memory_space<vmem>>, %arg2: memref<128x52xbf16, #tpu.memory_space<vmem>>, %arg3: memref<64x1xf32, #tpu.memory_space<vmem>>, %arg4: memref<64x64xbf16, #tpu.memory_space<vmem>>, %arg5: memref<64x1xf32, #tpu.memory_space<vmem>>, %arg6: memref<8x64xbf16, #tpu.memory_space<vmem>>, %arg7: memref<1x1xf32, #tpu.memory_space<vmem>>, %arg8: memref<1x128xf32, #tpu.memory_space<vmem>>) attributes {dimension_semantics = [#tpu.dimension_semantics<parallel>], iteration_bounds = array<i64: 1>, scalar_prefetch = 0 : i64, scratch_operands = 0 : i64, tpu.core_type = #tpu.core_type<tc>, window_params = [{transform_indices = @transform_0, window_bounds = array<i64: 52, 128>}, {pipeline_mode = #tpu.pipeline_mode<synchronous>, transform_indices = @transform_1, window_bounds = array<i64: 128, 52>}, {pipeline_mode = #tpu.pipeline_mode<synchronous>, transform_indices = @transform_2, window_bounds = array<i64: 64, 1>}, {pipeline_mode = #tpu.pipeline_mode<synchronous>, transform_indices = @transform_3, window_bounds = array<i64: 64, 64>}, {pipeline_mode = #tpu.pipeline_mode<synchronous>, transform_indices = @transform_4, window_bounds = array<i64: 64, 1>}, {pipeline_mode = #tpu.pipeline_mode<synchronous>, transform_indices = @transform_5, window_bounds = array<i64: 8, 64>}, {pipeline_mode = #tpu.pipeline_mode<synchronous>, transform_indices = @transform_6, window_bounds = array<i64: 1, 1>}, {transform_indices = @transform_7, window_bounds = array<i64: 1, 128>}]} {
    %c0 = arith.constant 0 : index
    %c0_0 = arith.constant 0 : index
    %0 = vector.load %arg1[%c0, %c0_0] : memref<52x128xbf16, #tpu.memory_space<vmem>>, vector<52x128xbf16>
    %c0_1 = arith.constant 0 : index
    %c0_2 = arith.constant 0 : index
    %1 = vector.load %arg2[%c0_1, %c0_2] : memref<128x52xbf16, #tpu.memory_space<vmem>>, vector<128x52xbf16>
    %cst = arith.constant dense<0.000000e+00> : vector<128x128xf32>
    %2 = tpu.matmul %1, %0, %cst {dimension_numbers = #tpu.dot_dimension_numbers<[1], [0], [0], [1], [0, 0, 1, 1], [], []>} : vector<128x52xbf16>, vector<52x128xbf16>, vector<128x128xf32> -> vector<128x128xf32>
    %3 = vector.extract_strided_slice %2 {offsets = [0, 0], sizes = [64, 128], strides = [1, 1]} : vector<128x128xf32> to vector<64x128xf32>
    %c0_3 = arith.constant 0 : index
    %c0_4 = arith.constant 0 : index
    %4 = vector.load %arg3[%c0_3, %c0_4] : memref<64x1xf32, #tpu.memory_space<vmem>>, vector<64x1xf32>
    %5 = vector.broadcast %4 : vector<64x1xf32> to vector<64x128xf32>
    %6 = arith.addf %3, %5 : vector<64x128xf32>
    %cst_5 = arith.constant 0.000000e+00 : f32
    %7 = vector.broadcast %cst_5 : f32 to vector<64x128xf32>
    %8 = arith.maximumf %6, %7 : vector<64x128xf32>
    %9 = vector.extract_strided_slice %2 {offsets = [64, 0], sizes = [64, 128], strides = [1, 1]} : vector<128x128xf32> to vector<64x128xf32>
    %c0_6 = arith.constant 0 : index
    %c0_7 = arith.constant 0 : index
    %10 = vector.load %arg4[%c0_6, %c0_7] : memref<64x64xbf16, #tpu.memory_space<vmem>>, vector<64x64xbf16>
    %11 = arith.truncf %8 : vector<64x128xf32> to vector<64x128xbf16>
    %cst_8 = arith.constant dense<0.000000e+00> : vector<64x128xf32>
    %12 = tpu.matmul %10, %11, %cst_8 {dimension_numbers = #tpu.dot_dimension_numbers<[1], [0], [0], [1], [0, 0, 1, 1], [], []>} : vector<64x64xbf16>, vector<64x128xbf16>, vector<64x128xf32> -> vector<64x128xf32>
    %13 = arith.addf %12, %9 : vector<64x128xf32>
    %c0_9 = arith.constant 0 : index
    %c0_10 = arith.constant 0 : index
    %14 = vector.load %arg5[%c0_9, %c0_10] : memref<64x1xf32, #tpu.memory_space<vmem>>, vector<64x1xf32>
    %15 = vector.broadcast %14 : vector<64x1xf32> to vector<64x128xf32>
    %16 = arith.addf %13, %15 : vector<64x128xf32>
    %cst_11 = arith.constant 0.000000e+00 : f32
    %17 = vector.broadcast %cst_11 : f32 to vector<64x128xf32>
    %18 = arith.maximumf %16, %17 : vector<64x128xf32>
    %c0_12 = arith.constant 0 : index
    %c0_13 = arith.constant 0 : index
    %19 = vector.load %arg6[%c0_12, %c0_13] : memref<8x64xbf16, #tpu.memory_space<vmem>>, vector<8x64xbf16>
    %20 = arith.truncf %18 : vector<64x128xf32> to vector<64x128xbf16>
    %cst_14 = arith.constant dense<0.000000e+00> : vector<8x128xf32>
    %21 = tpu.matmul %19, %20, %cst_14 {dimension_numbers = #tpu.dot_dimension_numbers<[1], [0], [0], [1], [0, 0, 1, 1], [], []>} : vector<8x64xbf16>, vector<64x128xbf16>, vector<8x128xf32> -> vector<8x128xf32>
    %22 = vector.extract_strided_slice %21 {offsets = [0, 0], sizes = [1, 128], strides = [1, 1]} : vector<8x128xf32> to vector<1x128xf32>
    %c0_15 = arith.constant 0 : index
    %c0_16 = arith.constant 0 : index
    %23 = vector.load %arg7[%c0_15, %c0_16] : memref<1x1xf32, #tpu.memory_space<vmem>>, vector<1x1xf32>
    %24 = vector.broadcast %23 : vector<1x1xf32> to vector<1x128xf32>
    %25 = arith.addf %22, %24 : vector<1x128xf32>
    %c0_17 = arith.constant 0 : index
    %c0_18 = arith.constant 0 : index
    %26 = vector.load %arg8[%c0_17, %c0_18] : memref<1x128xf32, #tpu.memory_space<vmem>>, vector<1x128xf32>
    tpu.vector_store %arg8[%c0_17, %c0_18], %25 {strides = array<i32>} : memref<1x128xf32, #tpu.memory_space<vmem>>, vector<1x128xf32>,
    return
  }
  func.func @transform_0(%arg0: i32) -> (i32, i32) {
    %c0_i32 = arith.constant 0 : i32
    %c0_i32_0 = arith.constant 0 : i32
    return %c0_i32, %arg0 : i32, i32
  }
  func.func @transform_1(%arg0: i32) -> (i32, i32) {
    %c0_i32 = arith.constant 0 : i32
    %c0_i32_0 = arith.constant 0 : i32
    %c0_i32_1 = arith.constant 0 : i32
    return %c0_i32, %c0_i32_0 : i32, i32
  }
  func.func @transform_2(%arg0: i32) -> (i32, i32) {
    %c0_i32 = arith.constant 0 : i32
    %c0_i32_0 = arith.constant 0 : i32
    %c0_i32_1 = arith.constant 0 : i32
    return %c0_i32, %c0_i32_0 : i32, i32
  }
  func.func @transform_3(%arg0: i32) -> (i32, i32) {
    %c0_i32 = arith.constant 0 : i32
    %c0_i32_0 = arith.constant 0 : i32
    %c0_i32_1 = arith.constant 0 : i32
    return %c0_i32, %c0_i32_0 : i32, i32
  }
  func.func @transform_4(%arg0: i32) -> (i32, i32) {
    %c0_i32 = arith.constant 0 : i32
    %c0_i32_0 = arith.constant 0 : i32
    %c0_i32_1 = arith.constant 0 : i32
    return %c0_i32, %c0_i32_0 : i32, i32
  }
  func.func @transform_5(%arg0: i32) -> (i32, i32) {
    %c0_i32 = arith.constant 0 : i32
    %c0_i32_0 = arith.constant 0 : i32
    %c0_i32_1 = arith.constant 0 : i32
    return %c0_i32, %c0_i32_0 : i32, i32
  }
  func.func @transform_6(%arg0: i32) -> (i32, i32) {
    %c0_i32 = arith.constant 0 : i32
    %c0_i32_0 = arith.constant 0 : i32
    %c0_i32_1 = arith.constant 0 : i32
    return %c0_i32, %c0_i32_0 : i32, i32
  }
  func.func @transform_7(%arg0: i32) -> (i32, i32) {
    %c0_i32 = arith.constant 0 : i32
    %c0_i32_0 = arith.constant 0 : i32
    return %c0_i32, %arg0 : i32, i32
  }
}

</mosaic_0001>

<llo_original>
// kernel: tpu_custom_call.1
$region0: #{tpu_custom_call.1}
  #allocation0 [shape = 'u32[]', space=smem, size = 0x4, offset = 0x4, fixed_abs, tag = 'smem constant byte address 0x4 - core index']
  #allocation1 [shape = 'u32[72,128]{1,0:T(1,128)}', space=vmem, size = 0x9000, scoped, tag = 'internal scratch']
  #allocation2 [shape = 'f32[1,1]{1,0:T(1,128)S(1)}', space=vmem, size = 0x200, scoped, tag = 'scoped memory for tpu_custom_call.1']
  %s0 = inlined_call_operand.vmem [shape: bf16[52,128], index: 0, kind: input, shape index: {}]
  %s1 = inlined_call_operand.vmem [shape: bf16[128,52], index: 1, kind: input, shape index: {}]
  %s2 = inlined_call_operand.vmem [shape: f32[64,1], index: 2, kind: input, shape index: {}]
  %s3 = inlined_call_operand.vmem [shape: bf16[64,64], index: 3, kind: input, shape index: {}]
  %s4 = inlined_call_operand.vmem [shape: f32[64,1], index: 4, kind: input, shape index: {}]
  %s5 = inlined_call_operand.vmem [shape: bf16[8,64], index: 5, kind: input, shape index: {}]
  %s6 = inlined_call_operand.<no memory space> [shape: f32[1,1], index: 6, kind: input, shape index: {}]
  %s7 = inlined_call_operand.hbm [shape: f32[1,128], index: 7, kind: output, shape index: {}]
  %s8 = sld [smem:[#allocation0]]
  $region38: #{tpu_custom_call.1} parent=0
    _
  %s10 = ssub.s32 1, %s8
  %s11 = scalar_select 0, %s10, %s8
  %v12 = vstv %s6
  %13 = vst [vmem:[#allocation2] sm:$0x1] %v12
  $region1: #{tpu_custom_call.1} parent=0
    #allocation3 [shape = 'u8[512]{0}', space=vmem, size = 0x400, scoped, tag = 'output window, operand 0, single buffered']
    #allocation4 [shape = 's32[1]{0}', space=sflag, size = 0x4, scoped, tag = 'scoped memory for tpu_custom_call.1']
    %14 = vsyncpa [#allocation4], 0
    // Predicated region
    $region2: #{tpu_custom_call.1} parent=1 // pred_check
      _
    $region3: #{tpu_custom_call.1} parent=1 // pred_check_branch
      %16 = sbr.rel (0) target = $region5
    $region4: #{tpu_custom_call.1} parent=1 // pred_region
      _
    $region5: #{tpu_custom_call.1} parent=1 // pred_fallthru
      _
    // Predicated region
    $region6: #{tpu_custom_call.1} parent=1 // pred_check
      _
    $region7: #{tpu_custom_call.1} parent=1 // pred_check_branch
      %18 = sbr.rel (0) target = $region9
    $region8: #{tpu_custom_call.1} parent=1 // pred_region
      _
    $region9: #{tpu_custom_call.1} parent=1 // pred_fallthru
      _
    // Predicated region
    $region10: #{tpu_custom_call.1} parent=1 // pred_check
      _
    $region11: #{tpu_custom_call.1} parent=1 // pred_check_branch
      %20 = sbr.rel (0) target = $region13
    $region12: #{tpu_custom_call.1} parent=1 // pred_region
      _
    $region13: #{tpu_custom_call.1} parent=1 // pred_fallthru
      _
    // Predicated region
    $region14: #{tpu_custom_call.1} parent=1 // pred_check
      _
    $region15: #{tpu_custom_call.1} parent=1 // pred_check_branch
      %22 = sbr.rel (0) target = $region17
    $region16: #{tpu_custom_call.1} parent=1 // pred_region
      _
    $region17: #{tpu_custom_call.1} parent=1 // pred_fallthru
      _
    // Predicated region
    $region18: #{tpu_custom_call.1} parent=1 // pred_check
      _
    $region19: #{tpu_custom_call.1} parent=1 // pred_check_branch
      %24 = sbr.rel (0) target = $region21
    $region20: #{tpu_custom_call.1} parent=1 // pred_region
      _
    $region21: #{tpu_custom_call.1} parent=1 // pred_fallthru
      _
    // Predicated region
    $region22: #{tpu_custom_call.1} parent=1 // pred_check
      _
    $region23: #{tpu_custom_call.1} parent=1 // pred_check_branch
      %26 = sbr.rel (0) target = $region25
    $region24: #{tpu_custom_call.1} parent=1 // pred_region
      _
    $region25: #{tpu_custom_call.1} parent=1 // pred_fallthru
      _
    // Predicated region
    $region26: #{tpu_custom_call.1} parent=1 // pred_check
      _
    $region27: #{tpu_custom_call.1} parent=1 // pred_check_branch
      %28 = sbr.rel (0) target = $region29
    $region28: #{tpu_custom_call.1} parent=1 // pred_region
      _
    $region29: #{tpu_custom_call.1} parent=1 // pred_fallthru
      _
    %v30 = vld [vmem:[%s0] sm:$0xf]
    %v31 = vld [vmem:[%s0 + $0x4] sm:$0xf]
    %v32 = vld [vmem:[%s0 + $0x8] sm:$0xf]
    %v33 = vld [vmem:[%s0 + $0xc] sm:$0xf]
    %v34 = vld [vmem:[%s0 + $0x10] sm:$0xf]
    %v35 = vld [vmem:[%s0 + $0x14] sm:$0xf]
    %v36 = vld [vmem:[%s0 + $0x18] sm:$0x3]
    %v37 = vld [vmem:[%s1] sm:$0xf]
    %v38 = vld [vmem:[%s1 + $0x4] sm:$0xf]
    %v39 = vld [vmem:[%s1 + $0x8] sm:$0xf]
    %v40 = vld [vmem:[%s1 + $0xc] sm:$0xf]
    %v41 = vld [vmem:[%s1 + $0x10] sm:$0xf]
    %v42 = vld [vmem:[%s1 + $0x14] sm:$0xf]
    %v43 = vld [vmem:[%s1 + $0x18] sm:$0xf]
    %v44 = vld [vmem:[%s1 + $0x1c] sm:$0xf]
    %v45 = vld [vmem:[%s1 + $0x20] sm:$0xf]
    %v46 = vld [vmem:[%s1 + $0x24] sm:$0xf]
    %v47 = vld [vmem:[%s1 + $0x28] sm:$0xf]
    %v48 = vld [vmem:[%s1 + $0x2c] sm:$0xf]
    %v49 = vld [vmem:[%s1 + $0x30] sm:$0xf]
    %v50 = vld [vmem:[%s1 + $0x34] sm:$0xf]
    %v51 = vld [vmem:[%s1 + $0x38] sm:$0xf]
    %v52 = vld [vmem:[%s1 + $0x3c] sm:$0xf]
    %v69 = vunpack.c.l.b16 %v37
    %v70 = vunpack.c.l.b16 %v38
    %v71 = vunpack.c.l.b16 %v39
    %v72 = vunpack.c.l.b16 %v40
    %v73 = vunpack.c.l.b16 %v41
    %v74 = vunpack.c.l.b16 %v42
    %v75 = vunpack.c.l.b16 %v43
    %v76 = vunpack.c.l.b16 %v44
    %v77 = vunpack.c.l.b16 %v45
    %v78 = vunpack.c.l.b16 %v46
    %v79 = vunpack.c.l.b16 %v47
    %v80 = vunpack.c.l.b16 %v48
    %v81 = vunpack.c.l.b16 %v49
    %v82 = vunpack.c.l.b16 %v50
    %v83 = vunpack.c.l.b16 %v51
    %v84 = vunpack.c.l.b16 %v52
    %v85 = vpack.c.b16 %v70, %v69
    %v86 = vpack.c.b16 %v72, %v71
    %v87 = vpack.c.b16 %v74, %v73
    %v88 = vpack.c.b16 %v76, %v75
    %v89 = vpack.c.b16 %v78, %v77
    %v90 = vpack.c.b16 %v80, %v79
    %v91 = vpack.c.b16 %v82, %v81
    %v92 = vpack.c.b16 %v84, %v83
    %v100 = vunpack.c.l.b16 %v30
    %v101 = vunpack.c.l.b16 %v31
    %v102 = vunpack.c.l.b16 %v32
    %v103 = vunpack.c.l.b16 %v33
    %v104 = vunpack.c.l.b16 %v34
    %v105 = vunpack.c.l.b16 %v35
    %v106 = vunpack.c.l.b16 %v36
    %v107 = vpack.c.b16 %v101, %v100
    %v108 = vpack.c.b16 %v103, %v102
    %v109 = vpack.c.b16 %v105, %v104
    %v110 = vpack.c.b16 %v106, %v106
    %vm114 = vcmask 424960
    %v116 = vsel %vm114, %v85, 0
    %v119 = vsel %vm114, %v86, 0
    %v122 = vsel %vm114, %v87, 0
    %v125 = vsel %vm114, %v88, 0
    %v128 = vsel %vm114, %v89, 0
    %v131 = vsel %vm114, %v90, 0
    %v134 = vsel %vm114, %v91, 0
    %v137 = vsel %vm114, %v92, 0
    %vm139 = vcmask 1041408
    %v141 = vsel %vm139, %v110, 0
    %143 = vmatpush.bf16.msra.mxu0 0
    %144 = vmatpush.bf16.msra.mxu0 0
    %145 = vmatpush.bf16.msra.mxu0 0
    %146 = vmatpush.bf16.msra.mxu0 0
    %147 = vmatpush.bf16.msra.mxu0 %v141
    %148 = vmatpush.bf16.msra.mxu0 %v109
    %149 = vmatpush.bf16.msra.mxu0 %v108
    %150 = vmatpush.bf16.msra.mxu0 %v107
    %151 = vmatmul.bf16.gmra.mxu0 %v116
    %v152 = vpop.f32.mrf.mxu0
    %v153 = vadd.f32 0.0, %v152
    %v154 = vpop.f32.mrf.mxu0
    %v155 = vadd.f32 0.0, %v154
    %156 = vmatmul.bf16.gmra.mxu0 %v119
    %v157 = vpop.f32.mrf.mxu0
    %v158 = vadd.f32 0.0, %v157
    %v159 = vpop.f32.mrf.mxu0
    %v160 = vadd.f32 0.0, %v159
    %161 = vmatmul.bf16.gmra.mxu0 %v122
    %v162 = vpop.f32.mrf.mxu0
    %v163 = vadd.f32 0.0, %v162
    %v164 = vpop.f32.mrf.mxu0
    %v165 = vadd.f32 0.0, %v164
    %166 = vmatmul.bf16.gmra.mxu0 %v125
    %v167 = vpop.f32.mrf.mxu0
    %v168 = vadd.f32 0.0, %v167
    %v169 = vpop.f32.mrf.mxu0
    %v170 = vadd.f32 0.0, %v169
    %171 = vmatmul.bf16.gmra.mxu0 %v128
    %v172 = vpop.f32.mrf.mxu0
    %v173 = vadd.f32 0.0, %v172
    %v174 = vpop.f32.mrf.mxu0
    %v175 = vadd.f32 0.0, %v174
    %176 = vmatmul.bf16.gmra.mxu0 %v131
    %v177 = vpop.f32.mrf.mxu0
    %v178 = vadd.f32 0.0, %v177
    %v179 = vpop.f32.mrf.mxu0
    %v180 = vadd.f32 0.0, %v179
    %181 = vmatmul.bf16.gmra.mxu0 %v134
    %v182 = vpop.f32.mrf.mxu0
    %v183 = vadd.f32 0.0, %v182
    %v184 = vpop.f32.mrf.mxu0
    %v185 = vadd.f32 0.0, %v184
    %186 = vmatmul.bf16.gmra.mxu0 %v137
    %v187 = vpop.f32.mrf.mxu0
    %v188 = vadd.f32 0.0, %v187
    %v189 = vpop.f32.mrf.mxu0
    %v190 = vadd.f32 0.0, %v189
    %191 = vdwg.mxu0
    %v192 = vld [vmem:[%s2] sm:$0xff]
    %v193 = vld [vmem:[%s2 + $0x8] sm:$0xff]
    %v194 = vld [vmem:[%s2 + $0x10] sm:$0xff]
    %v195 = vld [vmem:[%s2 + $0x18] sm:$0xff]
    %v196 = vld [vmem:[%s2 + $0x20] sm:$0xff]
    %v197 = vld [vmem:[%s2 + $0x28] sm:$0xff]
    %v198 = vld [vmem:[%s2 + $0x30] sm:$0xff]
    %v199 = vld [vmem:[%s2 + $0x38] sm:$0xff]
    %201 = vset.pattern.permute.xlu0 0
    %202 = vperm.xlu0 %201, %v192
    %v203 = vpop.permute.xlu0 %202
    %206 = vset.pattern.permute.xlu0 0
    %207 = vperm.xlu0 %206, %v193
    %v208 = vpop.permute.xlu0 %207
    %211 = vset.pattern.permute.xlu0 0
    %212 = vperm.xlu0 %211, %v194
    %v213 = vpop.permute.xlu0 %212
    %216 = vset.pattern.permute.xlu0 0
    %217 = vperm.xlu0 %216, %v195
    %v218 = vpop.permute.xlu0 %217
    %221 = vset.pattern.permute.xlu0 0
    %222 = vperm.xlu0 %221, %v196
    %v223 = vpop.permute.xlu0 %222
    %226 = vset.pattern.permute.xlu0 0
    %227 = vperm.xlu0 %226, %v197
    %v228 = vpop.permute.xlu0 %227
    %231 = vset.pattern.permute.xlu0 0
    %232 = vperm.xlu0 %231, %v198
    %v233 = vpop.permute.xlu0 %232
    %236 = vset.pattern.permute.xlu0 0
    %237 = vperm.xlu0 %236, %v199
    %v238 = vpop.permute.xlu0 %237
    %v240 = vadd.f32 %v153, %v203
    %v241 = vadd.f32 %v155, %v208
    %v242 = vadd.f32 %v158, %v213
    %v243 = vadd.f32 %v160, %v218
    %v244 = vadd.f32 %v163, %v223
    %v245 = vadd.f32 %v165, %v228
    %v246 = vadd.f32 %v168, %v233
    %v247 = vadd.f32 %v170, %v238
    %v248 = vmax.f32 %v240, 0.0
    %v249 = vmax.f32 %v241, 0.0
    %v250 = vmax.f32 %v242, 0.0
    %v251 = vmax.f32 %v243, 0.0
    %v252 = vmax.f32 %v244, 0.0
    %v253 = vmax.f32 %v245, 0.0
    %v254 = vmax.f32 %v246, 0.0
    %v255 = vmax.f32 %v247, 0.0
    %v256 = vld [vmem:[%s3] sm:$0xf]
    %v257 = vld [vmem:[%s3 + $0x4] sm:$0xf]
    %v258 = vld [vmem:[%s3 + $0x8] sm:$0xf]
    %v259 = vld [vmem:[%s3 + $0xc] sm:$0xf]
    %v260 = vld [vmem:[%s3 + $0x10] sm:$0xf]
    %v261 = vld [vmem:[%s3 + $0x14] sm:$0xf]
    %v262 = vld [vmem:[%s3 + $0x18] sm:$0xf]
    %v263 = vld [vmem:[%s3 + $0x1c] sm:$0xf]
    %v264 = vpack.c.bf16 %v249, %v248
    %v265 = vpack.c.bf16 %v251, %v250
    %v266 = vpack.c.bf16 %v253, %v252
    %v267 = vpack.c.bf16 %v255, %v254
    %v276 = vunpack.c.l.b16 %v256
    %v277 = vunpack.c.l.b16 %v257
    %v278 = vunpack.c.l.b16 %v258
    %v279 = vunpack.c.l.b16 %v259
    %v280 = vunpack.c.l.b16 %v260
    %v281 = vunpack.c.l.b16 %v261
    %v282 = vunpack.c.l.b16 %v262
    %v283 = vunpack.c.l.b16 %v263
    %v284 = vpack.c.b16 %v277, %v276
    %v285 = vpack.c.b16 %v279, %v278
    %v286 = vpack.c.b16 %v281, %v280
    %v287 = vpack.c.b16 %v283, %v282
    %vm288 = vcmask 523264
    %v290 = vsel %vm288, %v284, 0
    %v293 = vsel %vm288, %v285, 0
    %v296 = vsel %vm288, %v286, 0
    %v299 = vsel %vm288, %v287, 0
    %301 = vmatpush.bf16.msra.mxu0 0
    %302 = vmatpush.bf16.msra.mxu0 0
    %303 = vmatpush.bf16.msra.mxu0 0
    %304 = vmatpush.bf16.msra.mxu0 0
    %305 = vmatpush.bf16.msra.mxu0 %v267
    %306 = vmatpush.bf16.msra.mxu0 %v266
    %307 = vmatpush.bf16.msra.mxu0 %v265
    %308 = vmatpush.bf16.msra.mxu0 %v264
    %309 = vmatmul.bf16.gmra.mxu0 %v290
    %v310 = vpop.f32.mrf.mxu0
    %v311 = vadd.f32 %v173, %v310
    %v312 = vpop.f32.mrf.mxu0
    %v313 = vadd.f32 %v175, %v312
    %314 = vmatmul.bf16.gmra.mxu0 %v293
    %v315 = vpop.f32.mrf.mxu0
    %v316 = vadd.f32 %v178, %v315
    %v317 = vpop.f32.mrf.mxu0
    %v318 = vadd.f32 %v180, %v317
    %319 = vmatmul.bf16.gmra.mxu0 %v296
    %v320 = vpop.f32.mrf.mxu0
    %v321 = vadd.f32 %v183, %v320
    %v322 = vpop.f32.mrf.mxu0
    %v323 = vadd.f32 %v185, %v322
    %324 = vmatmul.bf16.gmra.mxu0 %v299
    %v325 = vpop.f32.mrf.mxu0
    %v326 = vadd.f32 %v188, %v325
    %v327 = vpop.f32.mrf.mxu0
    %v328 = vadd.f32 %v190, %v327
    %329 = vdwg.mxu0
    %v330 = vld [vmem:[%s4] sm:$0xff]
    %v331 = vld [vmem:[%s4 + $0x8] sm:$0xff]
    %v332 = vld [vmem:[%s4 + $0x10] sm:$0xff]
    %v333 = vld [vmem:[%s4 + $0x18] sm:$0xff]
    %v334 = vld [vmem:[%s4 + $0x20] sm:$0xff]
    %v335 = vld [vmem:[%s4 + $0x28] sm:$0xff]
    %v336 = vld [vmem:[%s4 + $0x30] sm:$0xff]
    %v337 = vld [vmem:[%s4 + $0x38] sm:$0xff]
    %339 = vset.pattern.permute.xlu0 0
    %340 = vperm.xlu0 %339, %v330
    %v341 = vpop.permute.xlu0 %340
    %344 = vset.pattern.permute.xlu0 0
    %345 = vperm.xlu0 %344, %v331
    %v346 = vpop.permute.xlu0 %345
    %349 = vset.pattern.permute.xlu0 0
    %350 = vperm.xlu0 %349, %v332
    %v351 = vpop.permute.xlu0 %350
    %354 = vset.pattern.permute.xlu0 0
    %355 = vperm.xlu0 %354, %v333
    %v356 = vpop.permute.xlu0 %355
    %359 = vset.pattern.permute.xlu0 0
    %360 = vperm.xlu0 %359, %v334
    %v361 = vpop.permute.xlu0 %360
    %364 = vset.pattern.permute.xlu0 0
    %365 = vperm.xlu0 %364, %v335
    %v366 = vpop.permute.xlu0 %365
    %369 = vset.pattern.permute.xlu0 0
    %370 = vperm.xlu0 %369, %v336
    %v371 = vpop.permute.xlu0 %370
    %374 = vset.pattern.permute.xlu0 0
    %375 = vperm.xlu0 %374, %v337
    %v376 = vpop.permute.xlu0 %375
    %v378 = vadd.f32 %v311, %v341
    %v379 = vadd.f32 %v313, %v346
    %v380 = vadd.f32 %v316, %v351
    %v381 = vadd.f32 %v318, %v356
    %v382 = vadd.f32 %v321, %v361
    %v383 = vadd.f32 %v323, %v366
    %v384 = vadd.f32 %v326, %v371
    %v385 = vadd.f32 %v328, %v376
    %v386 = vmax.f32 %v378, 0.0
    %v387 = vmax.f32 %v379, 0.0
    %v388 = vmax.f32 %v380, 0.0
    %v389 = vmax.f32 %v381, 0.0
    %v390 = vmax.f32 %v382, 0.0
    %v391 = vmax.f32 %v383, 0.0
    %v392 = vmax.f32 %v384, 0.0
    %v393 = vmax.f32 %v385, 0.0
    %v394 = vld [vmem:[%s5] sm:$0xf]
    %v395 = vpack.c.bf16 %v387, %v386
    %v396 = vpack.c.bf16 %v389, %v388
    %v397 = vpack.c.bf16 %v391, %v390
    %v398 = vpack.c.bf16 %v393, %v392
    %v400 = vsel %vm288, %v394, 0
    %402 = vmatpush.bf16.msra.mxu0 0
    %403 = vmatpush.bf16.msra.mxu0 0
    %404 = vmatpush.bf16.msra.mxu0 0
    %405 = vmatpush.bf16.msra.mxu0 0
    %406 = vmatpush.bf16.msra.mxu0 %v398
    %407 = vmatpush.bf16.msra.mxu0 %v397
    %408 = vmatpush.bf16.msra.mxu0 %v396
    %409 = vmatpush.bf16.msra.mxu0 %v395
    %410 = vmatmul.bf16.gmra.mxu0 %v400
    %v411 = vpop.f32.mrf.mxu0
    %v412 = vadd.f32 0.0, %v411
    %v413 = vpop.f32.mrf.mxu0
    %414 = vdwg.mxu0
    %v415 = vld [vmem:[#allocation2] sm:$0x1]
    %417 = vset.pattern.permute.xlu0 0
    %418 = vperm.xlu0 %417, %v415
    %v419 = vpop.permute.xlu0 %418
    %v421 = vperm.slane %v419, 0
    %v422 = vadd.f32 %v412, %v421
    %423 = vst [vmem:[#allocation3] sm:$0x1] %v422
    // Predicated region
    $region30: #{tpu_custom_call.1} parent=1 // pred_check
      _
    $region31: #{tpu_custom_call.1} parent=1 // pred_check_branch
      %425 = sbr.rel (0) target = $region33
    $region32: #{tpu_custom_call.1} parent=1 // pred_region
      %427 = vsyncadd [#allocation4], 0
      %s429 = sshll.u32 [#allocation3], 4
      %s430 = int_to_ptr.vmem [resolvable:$true] %s429
      %s431 = sshll.u32 %s7, 4
      %s432 = int_to_ptr.hbm [resolvable:$true] %s431
      %434 = dma.vmem_to_hbm [thread:$0]  %s430, 16, %s432, [#allocation4]
    $region33: #{tpu_custom_call.1} parent=1 // pred_fallthru
      _
    // Predicated region
    $region34: #{tpu_custom_call.1} parent=1 // pred_check
      _
    $region35: #{tpu_custom_call.1} parent=1 // pred_check_branch
      %436 = sbr.rel (0) target = $region37
    $region36: #{tpu_custom_call.1} parent=1 // pred_region
      %438 = dma.done [#allocation4], 16
    $region37: #{tpu_custom_call.1} parent=1 // pred_fallthru
      _
    %439 = vsyncpa [#allocation4], 1

</llo_original>
